<compile_context>
chip_gen: v5e
topology: v5e:2x2
jax: 0.10.0
libtpu: 0.0.40
codegen_flags: <defaults>
</compile_context>

<pallas_src>
import functools

import jax
import jax.numpy as jnp
from jax.experimental import pallas as pl
from jax.experimental.pallas import tpu as pltpu


def _convgru_kernel(x_ref, h_ref, wx_ref, wh_ref, b_ref, o_ref, *, inner):
    # x_ref: (C1, TP)   h_ref: (C2, TP)
    # wx_ref: (2*inner, C1)   wh_ref: (2*inner, C2)   b_ref: (2*inner, 1)
    # o_ref: (inner, TP)
    x = x_ref[...]
    h = h_ref[...]

    # Fused pre-activations for [r ; h_hat]: two MXU matmuls, f32 accumulate.
    pre = (jnp.dot(wx_ref[...], x, preferred_element_type=jnp.float32)
           + jnp.dot(wh_ref[...], h, preferred_element_type=jnp.float32)
           + b_ref[...].astype(jnp.float32))            # (2*inner, TP)

    r = jax.nn.sigmoid(pre[:inner, :])                  # reset gate
    h_hat = pre[inner:, :]                              # candidate pre-act

    # Elementwise stage in f32 (v5e VPU/EUP have no bf16 support).
    h_f32 = h.astype(jnp.float32)
    out = r * jnp.tanh(h_f32) + (1.0 - r) * jnp.tanh(h_hat)
    o_ref[...] = out.astype(o_ref.dtype)


def _pick_tile_p(hw, max_tile=4096):
    """Largest pixel tile: full row if small, else a multiple of 128 dividing hw."""
    if hw <= max_tile:
        return hw
    t = (max_tile // 128) * 128
    while t >= 128:
        if hw % t == 0:
            return t
        t -= 128
    return hw  # fall back to full row (block == full array dim is always legal)


def conv_gru_pallas(x_nchw, h_nchw, params, *, tile_p=None):
    """x_nchw: (N, C1, H, W); h_nchw: (N, C2, H, W). Returns (N, inner, H, W)."""
    n, c1, hh, ww = x_nchw.shape
    nh, c2, hh2, ww2 = h_nchw.shape
    assert (n, hh, ww) == (nh, hh2, ww2), "x and h must share batch/spatial dims"
    inner = params["w_x_r"].shape[1]
    assert inner == c2, "reference forward requires inner == in_channels2"

    hw = hh * ww
    if tile_p is None:
        tile_p = _pick_tile_p(hw)
    assert hw % tile_p == 0, "H*W must be divisible by the pixel tile"

    out_dtype = jnp.result_type(x_nchw.dtype, h_nchw.dtype)

    # Free views: NCHW -> (N, C, H*W). No data movement.
    x3 = x_nchw.reshape(n, c1, hw)
    h3 = h_nchw.reshape(n, c2, hw)

    # Fuse gate weights along the output dim; pre-fold biases (tiny host-side op).
    # Row layout of the fused output: [0:inner) -> r pre-act, [inner:2*inner) -> h_hat.
    wx_cat_t = jnp.concatenate([params["w_x_r"], params["w_x"]], axis=1).T    # (2I, C1)
    wh_cat_t = jnp.concatenate([params["w_h_r"], params["w_h_u"]], axis=1).T  # (2I, C2)
    b_cat = jnp.concatenate([params["b_x_r"] + params["b_h_r"],
                             params["b_x"] + params["b_h_u"]], axis=1).T      # (2I, 1)

    grid = (n, hw // tile_p)
    kernel = functools.partial(_convgru_kernel, inner=inner)

    out3 = pl.pallas_call(
        kernel,
        out_shape=jax.ShapeDtypeStruct((n, inner, hw), out_dtype),
        grid_spec=pltpu.PrefetchScalarGridSpec(
            num_scalar_prefetch=0,
            grid=grid,
            in_specs=[
                # batch dim squeezed out of the kernel Ref
                pl.BlockSpec((None, c1, tile_p), lambda b, p: (b, 0, p)),   # x tile
                pl.BlockSpec((None, c2, tile_p), lambda b, p: (b, 0, p)),   # h tile
                pl.BlockSpec((2 * inner, c1), lambda b, p: (0, 0)),         # fused Wx^T
                pl.BlockSpec((2 * inner, c2), lambda b, p: (0, 0)),         # fused Wh^T
                pl.BlockSpec((2 * inner, 1), lambda b, p: (0, 0)),          # fused bias
            ],
            out_specs=pl.BlockSpec((None, inner, tile_p), lambda b, p: (b, 0, p)),
        ),
        compiler_params=pltpu.CompilerParams(
            dimension_semantics=("parallel", "parallel"),
            vmem_limit_bytes=64 << 20,
        ),
    )(x3, h3, wx_cat_t, wh_cat_t, b_cat)

    return out3.reshape(n, inner, hh, ww)


def init_params(key, in_channels1, in_channels2, inner, dtype=jnp.float32):
    """Deterministic init mimicking nn.Conv2d default (uniform +- 1/sqrt(fan_in)).

    Weights stored as (C_in, C_out) -- PyTorch's (C_out, C_in, 1, 1) squeezed and
    transposed -- so a 1x1 conv is a plain channel matmul.
    """
    keys = jax.random.split(key, 8)

    def conv_init(kw, kb, cin, cout):
        bound = 1.0 / jnp.sqrt(jnp.array(cin, dtype=jnp.float32))
        w = jax.random.uniform(kw, (cin, cout), dtype, -bound, bound)
        b = jax.random.uniform(kb, (1, cout), dtype, -bound, bound)
        return w, b

    w_x_r, b_x_r = conv_init(keys[0], keys[1], in_channels1, inner)
    w_h_r, b_h_r = conv_init(keys[2], keys[3], in_channels2, inner)
    w_x, b_x = conv_init(keys[4], keys[5], in_channels1, inner)
    w_h_u, b_h_u = conv_init(keys[6], keys[7], in_channels2, inner)
    return dict(w_x_r=w_x_r, b_x_r=b_x_r, w_h_r=w_h_r, b_h_r=b_h_r,
                w_x=w_x, b_x=b_x, w_h_u=w_h_u, b_h_u=b_h_u)


def conv_gru_reference(x_nchw, h_nchw, params):
    """Pure-JAX reference of the PyTorch forward (for sanity checking)."""
    def conv1x1(inp, w, b):
        y = jnp.einsum("nchw,cd->ndhw", inp, w)
        return y + b[0][None, :, None, None]

    r = jax.nn.sigmoid(conv1x1(x_nchw, params["w_x_r"], params["b_x_r"])
                       + conv1x1(h_nchw, params["w_h_r"], params["b_h_r"]))
    h_hat = (conv1x1(x_nchw, params["w_x"], params["b_x"])
             + conv1x1(h_nchw, params["w_h_u"], params["b_h_u"]))
    return r * jnp.tanh(h_nchw) + (1.0 - r) * jnp.tanh(h_hat)


if __name__ == "__main__":
    # Small shapes: batch=2, in_channels1=4, hidden (in_channels2=inner)=32, 16x16 spatial.
    N, C1, C2, INNER, H, W = 2, 4, 32, 32, 16, 16

    key = jax.random.PRNGKey(0)
    kx, kh, kp = jax.random.split(key, 3)
    x = jax.random.normal(kx, (N, C1, H, W), jnp.float32)
    h_prev = jax.random.normal(kh, (N, C2, H, W), jnp.float32)
    params = init_params(kp, C1, C2, INNER)

    h_t = conv_gru_pallas(x, h_prev, params)
    h_t = jax.block_until_ready(h_t)

    ref = conv_gru_reference(x, h_prev, params)
    assert h_t.shape == (N, INNER, H, W)
    assert jnp.allclose(h_t, ref, atol=1e-5, rtol=1e-5)

    print("KERNEL_OK")
</pallas_src>

<mosaic_0001>
module attributes {stable_mosaic.version = 11 : i64} {
  func.func @_convgru_kernel(%arg0: i32, %arg1: i32, %arg2: memref<1x4x256xf32, #tpu.memory_space<vmem>>, %arg3: memref<1x32x256xf32, #tpu.memory_space<vmem>>, %arg4: memref<64x4xf32, #tpu.memory_space<vmem>>, %arg5: memref<64x32xf32, #tpu.memory_space<vmem>>, %arg6: memref<64x1xf32, #tpu.memory_space<vmem>>, %arg7: memref<1x32x256xf32, #tpu.memory_space<vmem>>) attributes {dimension_semantics = [#tpu.dimension_semantics<parallel>, #tpu.dimension_semantics<parallel>], iteration_bounds = array<i64: 2, 1>, scalar_prefetch = 0 : i64, scratch_operands = 0 : i64, tpu.core_type = #tpu.core_type<tc>, window_params = [{transform_indices = @transform_0, window_bounds = array<i64: 1, 4, 256>}, {transform_indices = @transform_1, window_bounds = array<i64: 1, 32, 256>}, {pipeline_mode = #tpu.pipeline_mode<synchronous>, transform_indices = @transform_2, window_bounds = array<i64: 64, 4>}, {pipeline_mode = #tpu.pipeline_mode<synchronous>, transform_indices = @transform_3, window_bounds = array<i64: 64, 32>}, {pipeline_mode = #tpu.pipeline_mode<synchronous>, transform_indices = @transform_4, window_bounds = array<i64: 64, 1>}, {transform_indices = @transform_5, window_bounds = array<i64: 1, 32, 256>}]} {
    %c0 = arith.constant 0 : index
    %c0_0 = arith.constant 0 : index
    %c0_1 = arith.constant 0 : index
    %0 = vector.load %arg2[%c0, %c0_0, %c0_1] : memref<1x4x256xf32, #tpu.memory_space<vmem>>, vector<1x4x256xf32>
    %1 = vector.shape_cast %0 : vector<1x4x256xf32> to vector<4x256xf32>
    %c0_2 = arith.constant 0 : index
    %c0_3 = arith.constant 0 : index
    %c0_4 = arith.constant 0 : index
    %2 = vector.load %arg3[%c0_2, %c0_3, %c0_4] : memref<1x32x256xf32, #tpu.memory_space<vmem>>, vector<1x32x256xf32>
    %3 = vector.shape_cast %2 : vector<1x32x256xf32> to vector<32x256xf32>
    %c0_5 = arith.constant 0 : index
    %c0_6 = arith.constant 0 : index
    %4 = vector.load %arg4[%c0_5, %c0_6] : memref<64x4xf32, #tpu.memory_space<vmem>>, vector<64x4xf32>
    %cst = arith.constant dense<0.000000e+00> : vector<64x256xf32>
    %5 = tpu.matmul %4, %1, %cst {dimension_numbers = #tpu.dot_dimension_numbers<[1], [0], [0], [1], [0, 0, 1, 1], [], []>} : vector<64x4xf32>, vector<4x256xf32>, vector<64x256xf32> -> vector<64x256xf32>
    %c0_7 = arith.constant 0 : index
    %c0_8 = arith.constant 0 : index
    %6 = vector.load %arg5[%c0_7, %c0_8] : memref<64x32xf32, #tpu.memory_space<vmem>>, vector<64x32xf32>
    %cst_9 = arith.constant dense<0.000000e+00> : vector<64x256xf32>
    %7 = tpu.matmul %6, %3, %cst_9 {dimension_numbers = #tpu.dot_dimension_numbers<[1], [0], [0], [1], [0, 0, 1, 1], [], []>} : vector<64x32xf32>, vector<32x256xf32>, vector<64x256xf32> -> vector<64x256xf32>
    %8 = arith.addf %5, %7 : vector<64x256xf32>
    %c0_10 = arith.constant 0 : index
    %c0_11 = arith.constant 0 : index
    %9 = vector.load %arg6[%c0_10, %c0_11] : memref<64x1xf32, #tpu.memory_space<vmem>>, vector<64x1xf32>
    %10 = vector.broadcast %9 : vector<64x1xf32> to vector<64x256xf32>
    %11 = arith.addf %8, %10 : vector<64x256xf32>
    %12 = vector.extract_strided_slice %11 {offsets = [0, 0], sizes = [32, 256], strides = [1, 1]} : vector<64x256xf32> to vector<32x256xf32>
    %13 = arith.negf %12 : vector<32x256xf32>
    %14 = math.exp %13 : vector<32x256xf32>
    %cst_12 = arith.constant 1.000000e+00 : f32
    %15 = vector.broadcast %cst_12 : f32 to vector<32x256xf32>
    %16 = arith.addf %15, %14 : vector<32x256xf32>
    %17 = arith.divf %15, %16 : vector<32x256xf32>
    %18 = vector.extract_strided_slice %11 {offsets = [32, 0], sizes = [32, 256], strides = [1, 1]} : vector<64x256xf32> to vector<32x256xf32>
    %19 = math.tanh %3 : vector<32x256xf32>
    %20 = arith.mulf %17, %19 : vector<32x256xf32>
    %cst_13 = arith.constant 1.000000e+00 : f32
    %21 = vector.broadcast %cst_13 : f32 to vector<32x256xf32>
    %22 = arith.subf %21, %17 : vector<32x256xf32>
    %23 = math.tanh %18 : vector<32x256xf32>
    %24 = arith.mulf %22, %23 : vector<32x256xf32>
    %25 = arith.addf %20, %24 : vector<32x256xf32>
    %c0_14 = arith.constant 0 : index
    %c0_15 = arith.constant 0 : index
    %c0_16 = arith.constant 0 : index
    %26 = vector.load %arg7[%c0_14, %c0_15, %c0_16] : memref<1x32x256xf32, #tpu.memory_space<vmem>>, vector<1x32x256xf32>
    %27 = vector.shape_cast %26 : vector<1x32x256xf32> to vector<32x256xf32>
    %28 = vector.shape_cast %25 : vector<32x256xf32> to vector<1x32x256xf32>
    tpu.vector_store %arg7[%c0_14, %c0_15, %c0_16], %28 {strides = array<i32>} : memref<1x32x256xf32, #tpu.memory_space<vmem>>, vector<1x32x256xf32>,
    return
  }
  func.func @transform_0(%arg0: i32, %arg1: i32) -> (i32, i32, i32) {
    %c0_i32 = arith.constant 0 : i32
    %c0_i32_0 = arith.constant 0 : i32
    return %arg0, %c0_i32, %arg1 : i32, i32, i32
  }
  func.func @transform_1(%arg0: i32, %arg1: i32) -> (i32, i32, i32) {
    %c0_i32 = arith.constant 0 : i32
    %c0_i32_0 = arith.constant 0 : i32
    return %arg0, %c0_i32, %arg1 : i32, i32, i32
  }
  func.func @transform_2(%arg0: i32, %arg1: i32) -> (i32, i32) {
    %c0_i32 = arith.constant 0 : i32
    %c0_i32_0 = arith.constant 0 : i32
    %c0_i32_1 = arith.constant 0 : i32
    return %c0_i32, %c0_i32_0 : i32, i32
  }
  func.func @transform_3(%arg0: i32, %arg1: i32) -> (i32, i32) {
    %c0_i32 = arith.constant 0 : i32
    %c0_i32_0 = arith.constant 0 : i32
    %c0_i32_1 = arith.constant 0 : i32
    return %c0_i32, %c0_i32_0 : i32, i32
  }
  func.func @transform_4(%arg0: i32, %arg1: i32) -> (i32, i32) {
    %c0_i32 = arith.constant 0 : i32
    %c0_i32_0 = arith.constant 0 : i32
    %c0_i32_1 = arith.constant 0 : i32
    return %c0_i32, %c0_i32_0 : i32, i32
  }
  func.func @transform_5(%arg0: i32, %arg1: i32) -> (i32, i32, i32) {
    %c0_i32 = arith.constant 0 : i32
    %c0_i32_0 = arith.constant 0 : i32
    return %arg0, %c0_i32, %arg1 : i32, i32, i32
  }
}

</mosaic_0001>

<llo_original>
// kernel: tpu_custom_call.1
$region0: #{tpu_custom_call.1}
  #allocation0 [shape = 'u32[]', space=smem, size = 0x4, offset = 0x4, fixed_abs, tag = 'smem constant byte address 0x4 - core index']
  #allocation1 [shape = 'u32[72,128]{1,0:T(1,128)}', space=vmem, size = 0x9000, scoped, tag = 'internal scratch']
  %s0 = inlined_call_operand.vmem [shape: f32[2,4,256], index: 0, kind: input, shape index: {}]
  %s1 = inlined_call_operand.vmem [shape: f32[2,32,256], index: 1, kind: input, shape index: {}]
  %s2 = inlined_call_operand.vmem [shape: f32[64,4], index: 2, kind: input, shape index: {}]
  %s3 = inlined_call_operand.vmem [shape: f32[64,32], index: 3, kind: input, shape index: {}]
  %s4 = inlined_call_operand.vmem [shape: f32[64,1], index: 4, kind: input, shape index: {}]
  %s5 = inlined_call_operand.hbm [shape: f32[2,32,256], index: 5, kind: output, shape index: {}]
  %s6 = sld [smem:[#allocation0]]
  $region53: #{tpu_custom_call.1} parent=0
    _
  %s8 = ssub.s32 1, %s6
  %s9 = scalar_select 0, %s8, %s6
  $region1: #{tpu_custom_call.1} parent=0
    #allocation2 [shape = 'u8[65536]{0}', space=vmem, size = 0x10000, scoped, tag = 'output window, operand 0']
    #allocation3 [shape = 's32[2]{0}', space=sflag, size = 0x8, scoped, tag = 'scoped memory for tpu_custom_call.1']
    %10 = vsyncpa [#allocation3], 0
    %s11 = scalar_lea.sflag [#allocation3], 1
    %12 = vsyncpa %s11, 0
    loop: start=0, step=1, limit=4
    $region2: #{tpu_custom_call.1} parent=1 // loop_pre_header
      _
    $region3: #{tpu_custom_call.1} parent=1 // loop_header
      %s14 = sphi 0, %s18
      %p15 = scmp.ge.s32.totalorder %s14, 4
      %s21 = sphi 0, %s33
      %s22 = sphi 0, %s29
      %s23 = sphi 0, %s21
      %s24 = sphi 0, %s22
      %s25 = sphi 0, %s23
      %s26 = sphi 0, %s24
      %s38 = sphi 0, %s40
      %s41 = sphi 0, %s38
      %s42 = sphi 0, %s41
      %s58 = sphi 0, %s42
      %s66 = sphi 0, %s68
      %s69 = sphi 0, %s66
      %s70 = sphi 0, %s69
      %s86 = sphi 0, %s70
      %s90 = sphi 0, %s90
      %s92 = sphi 0, %s90
      %s93 = sphi 0, %s92
      %s107 = sphi 0, %s93
      %s111 = sphi 0, %s111
      %s113 = sphi 0, %s111
      %s114 = sphi 0, %s113
      %s128 = sphi 0, %s114
      %s132 = sphi 0, %s132
      %s134 = sphi 0, %s132
      %s135 = sphi 0, %s134
      %s149 = sphi 0, %s135
      %s157 = sphi 0, %s159
      %s160 = sphi 0, %s157
      %s161 = sphi 0, %s160
      %s177 = sphi 0, %s161
    $region4: #{tpu_custom_call.1} parent=1 // loop_header_branch
      %17 = sbr.rel (%p15) target = $region8
    $region5: #{tpu_custom_call.1} parent=1 // loop_body
      %s19 = ssub.s32 %s14, 1
      %s20 = ssub.s32 %s14, 2
      %s27 = sadd.s32 1, %s22
      %p28 = scmp.ge.s32.totalorder %s27, 1
      %s29 = scalar_select %p28, 0, %s27
      %s30 = sadd.s32 1, %s21
      %s31 = scalar_select %p28, %s30, %s21
      %p32 = scmp.ge.s32.totalorder %s31, 2
      %s33 = scalar_select %p32, 0, %s31
      %s34 = ssub.s32 %s21, %s33
      %s35 = ssub.s32 %s22, %s29
      %s36 = sor.u32 %s34, %s35
      %p37 = scmp.eq.s32.totalorder %s36, 0
      %s39 = sadd.s32 %s38, 1
      %s40 = scalar_select %p37, %s38, %s39
      %p43 = pneg %p37
      %p44 = scmp.eq.s32.totalorder %s14, 1
      %p45 = por %p43, %p44
      %p46 = scmp.ne.s32.totalorder %s38, %s41
      %p47 = scmp.eq.s32.totalorder %s14, 0
      %p48 = por %p46, %p47
      %p49 = scmp.ne.s32.totalorder %s38, %s41
      %p50 = scmp.eq.s32.totalorder %s19, 1
      %p51 = por %p49, %p50
      %p52 = scmp.ne.s32.totalorder %s41, %s42
      %p53 = scmp.eq.s32.totalorder %s19, 0
      %p54 = por %p52, %p53
      %p55 = scmp.ne.s32.totalorder %s41, %s42
      %p56 = scmp.eq.s32.totalorder %s20, 1
      %p57 = por %p55, %p56
      %p59 = scmp.ne.s32.totalorder %s42, %s58
      %p60 = scmp.eq.s32.totalorder %s20, 0
      %p61 = por %p59, %p60
      %s62 = ssub.s32 %s21, %s33
      %s63 = ssub.s32 %s22, %s29
      %s64 = sor.u32 %s62, %s63
      %p65 = scmp.eq.s32.totalorder %s64, 0
      %s67 = sadd.s32 %s66, 1
      %s68 = scalar_select %p65, %s66, %s67
      %p71 = pneg %p65
      %p72 = scmp.eq.s32.totalorder %s14, 1
      %p73 = por %p71, %p72
      %p74 = scmp.ne.s32.totalorder %s66, %s69
      %p75 = scmp.eq.s32.totalorder %s14, 0
      %p76 = por %p74, %p75
      %p77 = scmp.ne.s32.totalorder %s66, %s69
      %p78 = scmp.eq.s32.totalorder %s19, 1
      %p79 = por %p77, %p78
      %p80 = scmp.ne.s32.totalorder %s69, %s70
      %p81 = scmp.eq.s32.totalorder %s19, 0
      %p82 = por %p80, %p81
      %p83 = scmp.ne.s32.totalorder %s69, %s70
      %p84 = scmp.eq.s32.totalorder %s20, 1
      %p85 = por %p83, %p84
      %p87 = scmp.ne.s32.totalorder %s70, %s86
      %p88 = scmp.eq.s32.totalorder %s20, 0
      %p89 = por %p87, %p88
      %s91 = sadd.s32 %s90, 1
      %p94 = scmp.eq.s32.totalorder %s14, 1
      %p95 = scmp.ne.s32.totalorder %s90, %s92
      %p96 = scmp.eq.s32.totalorder %s14, 0
      %p97 = por %p95, %p96
      %p98 = scmp.ne.s32.totalorder %s90, %s92
      %p99 = scmp.eq.s32.totalorder %s19, 1
      %p100 = por %p98, %p99
      %p101 = scmp.ne.s32.totalorder %s92, %s93
      %p102 = scmp.eq.s32.totalorder %s19, 0
      %p103 = por %p101, %p102
      %p104 = scmp.ne.s32.totalorder %s92, %s93
      %p105 = scmp.eq.s32.totalorder %s20, 1
      %p106 = por %p104, %p105
      %p108 = scmp.ne.s32.totalorder %s93, %s107
      %p109 = scmp.eq.s32.totalorder %s20, 0
      %p110 = por %p108, %p109
      %s112 = sadd.s32 %s111, 1
      %p115 = scmp.eq.s32.totalorder %s14, 1
      %p116 = scmp.ne.s32.totalorder %s111, %s113
      %p117 = scmp.eq.s32.totalorder %s14, 0
      %p118 = por %p116, %p117
      %p119 = scmp.ne.s32.totalorder %s111, %s113
      %p120 = scmp.eq.s32.totalorder %s19, 1
      %p121 = por %p119, %p120
      %p122 = scmp.ne.s32.totalorder %s113, %s114
      %p123 = scmp.eq.s32.totalorder %s19, 0
      %p124 = por %p122, %p123
      %p125 = scmp.ne.s32.totalorder %s113, %s114
      %p126 = scmp.eq.s32.totalorder %s20, 1
      %p127 = por %p125, %p126
      %p129 = scmp.ne.s32.totalorder %s114, %s128
      %p130 = scmp.eq.s32.totalorder %s20, 0
      %p131 = por %p129, %p130
      %s133 = sadd.s32 %s132, 1
      %p136 = scmp.eq.s32.totalorder %s14, 1
      %p137 = scmp.ne.s32.totalorder %s132, %s134
      %p138 = scmp.eq.s32.totalorder %s14, 0
      %p139 = por %p137, %p138
      %p140 = scmp.ne.s32.totalorder %s132, %s134
      %p141 = scmp.eq.s32.totalorder %s19, 1
      %p142 = por %p140, %p141
      %p143 = scmp.ne.s32.totalorder %s134, %s135
      %p144 = scmp.eq.s32.totalorder %s19, 0
      %p145 = por %p143, %p144
      %p146 = scmp.ne.s32.totalorder %s134, %s135
      %p147 = scmp.eq.s32.totalorder %s20, 1
      %p148 = por %p146, %p147
      %p150 = scmp.ne.s32.totalorder %s135, %s149
      %p151 = scmp.eq.s32.totalorder %s20, 0
      %p152 = por %p150, %p151
      %s153 = ssub.s32 %s21, %s33
      %s154 = ssub.s32 %s22, %s29
      %s155 = sor.u32 %s153, %s154
      %p156 = scmp.eq.s32.totalorder %s155, 0
      %s158 = sadd.s32 %s157, 1
      %s159 = scalar_select %p156, %s157, %s158
      %p162 = pneg %p156
      %p163 = scmp.eq.s32.totalorder %s14, 1
      %p164 = por %p162, %p163
      %p165 = scmp.ne.s32.totalorder %s157, %s160
      %p166 = scmp.eq.s32.totalorder %s14, 0
      %p167 = por %p165, %p166
      %p168 = scmp.ne.s32.totalorder %s157, %s160
      %p169 = scmp.eq.s32.totalorder %s19, 1
      %p170 = por %p168, %p169
      %p171 = scmp.ne.s32.totalorder %s160, %s161
      %p172 = scmp.eq.s32.totalorder %s19, 0
      %p173 = por %p171, %p172
      %p174 = scmp.ne.s32.totalorder %s160, %s161
      %p175 = scmp.eq.s32.totalorder %s20, 1
      %p176 = por %p174, %p175
      %p178 = scmp.ne.s32.totalorder %s161, %s177
      %p179 = scmp.eq.s32.totalorder %s20, 0
      %p180 = por %p178, %p179
      %p181 = scmp.le.s32.totalorder 1, %s14
      %p182 = scmp.lt.s32.totalorder %s14, 3
      %p183 = pnand %p181, %p182
      %p184 = pneg %p183
      // Predicated region
      $region9: #{tpu_custom_call.1} parent=5 // pred_check
        _
      $region10: #{tpu_custom_call.1} parent=5 // pred_check_branch
        %186 = sbr.rel (%p183) target = $region12
      $region11: #{tpu_custom_call.1} parent=5 // pred_region
        %s187 = ssub.s32 %s14, 1
        // Predicated region
        $region13: #{tpu_custom_call.1} parent=11 // pred_check
          %p188 = pneg %p103
        $region14: #{tpu_custom_call.1} parent=11 // pred_check_branch
          %190 = sbr.rel (%p188) target = $region16
        $region15: #{tpu_custom_call.1} parent=11 // pred_region
          _
        $region16: #{tpu_custom_call.1} parent=11 // pred_fallthru
          _
        // Predicated region
        $region17: #{tpu_custom_call.1} parent=11 // pred_check
          %p191 = pneg %p124
        $region18: #{tpu_custom_call.1} parent=11 // pred_check_branch
          %193 = sbr.rel (%p191) target = $region20
        $region19: #{tpu_custom_call.1} parent=11 // pred_region
          _
        $region20: #{tpu_custom_call.1} parent=11 // pred_fallthru
          _
        // Predicated region
        $region21: #{tpu_custom_call.1} parent=11 // pred_check
          %p194 = pneg %p145
        $region22: #{tpu_custom_call.1} parent=11 // pred_check_branch
          %196 = sbr.rel (%p194) target = $region24
        $region23: #{tpu_custom_call.1} parent=11 // pred_region
          _
        $region24: #{tpu_custom_call.1} parent=11 // pred_fallthru
          _
      $region12: #{tpu_custom_call.1} parent=5 // pred_fallthru
        _
      %p197 = scmp.lt.s32.totalorder %s14, 2
      // Predicated region
      $region25: #{tpu_custom_call.1} parent=5 // pred_check
        %p198 = pneg %p197
      $region26: #{tpu_custom_call.1} parent=5 // pred_check_branch
        %200 = sbr.rel (%p198) target = $region28
      $region27: #{tpu_custom_call.1} parent=5 // pred_region
        // Predicated region
        $region29: #{tpu_custom_call.1} parent=27 // pred_check
          %p201 = pneg %p48
        $region30: #{tpu_custom_call.1} parent=27 // pred_check_branch
          %203 = sbr.rel (%p201) target = $region32
        $region31: #{tpu_custom_call.1} parent=27 // pred_region
          %s204 = smul.u32 2, %s22
          %p205 = scmp.lt.s32.totalorder %s21, 1
          %s206 = scalar_select %p205, %s21, 1
          %p207 = scmp.lt.s32.totalorder %s204, 1
          %s208 = scalar_select %p207, %s204, 1
          %s209 = smul.addr %s206, 2
          %s210 = sadd.s32 %s208, %s209
          %s211 = smul.addr %s210, 4
          %s212 = scalar_lea.vmem %s0, %s211
          %s213 = smul.u32 2, %s22
        $region32: #{tpu_custom_call.1} parent=27 // pred_fallthru
          _
        // Predicated region
        $region33: #{tpu_custom_call.1} parent=27 // pred_check
          %p214 = pneg %p76
        $region34: #{tpu_custom_call.1} parent=27 // pred_check_branch
          %216 = sbr.rel (%p214) target = $region36
        $region35: #{tpu_custom_call.1} parent=27 // pred_region
          %s217 = smul.u32 2, %s22
          %p218 = scmp.lt.s32.totalorder %s21, 1
          %s219 = scalar_select %p218, %s21, 1
          %p220 = scmp.lt.s32.totalorder %s217, 1
          %s221 = scalar_select %p220, %s217, 1
          %s222 = smul.addr %s219, 8
          %s223 = sadd.s32 %s221, %s222
          %s224 = smul.addr %s223, 8
          %s225 = scalar_lea.vmem %s1, %s224
          %s226 = smul.u32 2, %s22
        $region36: #{tpu_custom_call.1} parent=27 // pred_fallthru
          _
      $region28: #{tpu_custom_call.1} parent=5 // pred_fallthru
        _
      %p227 = scmp.le.s32.totalorder 1, %s14
      %p228 = scmp.lt.s32.totalorder %s14, 3
      %p229 = pnand %p227, %p228
      %p230 = pneg %p229
      // Predicated region
      $region37: #{tpu_custom_call.1} parent=5 // pred_check
        _
      $region38: #{tpu_custom_call.1} parent=5 // pred_check_branch
        %232 = sbr.rel (%p229) target = $region40
      $region39: #{tpu_custom_call.1} parent=5 // pred_region
        %s233 = ssub.s32 %s14, 1
        %s234 = smul.u32 2, %s24
        %p235 = scmp.lt.s32.totalorder %s23, 1
        %s236 = scalar_select %p235, %s23, 1
        %p237 = scmp.lt.s32.totalorder %s234, 1
        %s238 = scalar_select %p237, %s234, 1
        %s239 = smul.addr %s236, 2
        %s240 = sadd.s32 %s238, %s239
        %s241 = smul.addr %s240, 4
        %s242 = scalar_lea.vmem %s0, %s241
        %p243 = pneg %p54
        %p244 = pneg %p51
        %s245 = smul.u32 2, %s24
        %p246 = scmp.lt.s32.totalorder %s23, 1
        %s247 = scalar_select %p246, %s23, 1
        %p248 = scmp.lt.s32.totalorder %s245, 1
        %s249 = scalar_select %p248, %s245, 1
        %s250 = smul.addr %s247, 8
        %s251 = sadd.s32 %s249, %s250
        %s252 = smul.addr %s251, 8
        %s253 = scalar_lea.vmem %s1, %s252
        %p254 = pneg %p82
        %p255 = pneg %p79
        %p256 = pneg %p103
        %p257 = pneg %p100
        %p258 = pneg %p124
        %p259 = pneg %p121
        %p260 = pneg %p145
        %p261 = pneg %p142
        %p262 = pneg %p173
        %p263 = pneg %p170
        %s264 = sand.u32 %s160, 1
        %s265 = scalar_lea.sflag [#allocation3], %s264
        %s266 = sand.u32 %s160, 1
        %s267 = smul.addr %s266, 64
        %s268 = scalar_lea.vmem [#allocation2], %s267
        %s269 = smul.u32 2, %s24
        %p270 = scmp.lt.s32.totalorder %s23, 1
        %s271 = scalar_select %p270, %s23, 1
        %p272 = scmp.lt.s32.totalorder %s269, 1
        %s273 = scalar_select %p272, %s269, 1
        %s274 = smul.addr %s271, 2
        %s275 = sadd.s32 %s273, %s274
        %s276 = smul.addr %s275, 4
        %s277 = scalar_lea.vmem %s0, %s276
        %s278 = smul.u32 2, %s24
        %s279 = smul.u32 2, %s24
        %p280 = scmp.lt.s32.totalorder %s23, 1
        %s281 = scalar_select %p280, %s23, 1
        %p282 = scmp.lt.s32.totalorder %s279, 1
        %s283 = scalar_select %p282, %s279, 1
        %s284 = smul.addr %s281, 8
        %s285 = sadd.s32 %s283, %s284
        %s286 = smul.addr %s285, 8
        %s287 = scalar_lea.vmem %s1, %s286
        %s288 = smul.u32 2, %s24
        %s289 = smul.u32 2, %s24
        %v290 = vld [vmem:[%s277] sm:$0xff]
        %v291 = vld [vmem:[%s287] sm:$0xff]
        %v292 = vld [vmem:[%s287 + $0x8] sm:$0xff]
        %v293 = vld [vmem:[%s287 + $0x10] sm:$0xff]
        %v294 = vld [vmem:[%s287 + $0x18] sm:$0xff]
        %v295 = vld [vmem:[%s287 + $0x20] sm:$0xff]
        %v296 = vld [vmem:[%s287 + $0x28] sm:$0xff]
        %v297 = vld [vmem:[%s287 + $0x30] sm:$0xff]
        %v298 = vld [vmem:[%s287 + $0x38] sm:$0xff]
        %v299 = vld [vmem:[%s2] sm:$0xff]
        %v300 = vld [vmem:[%s2 + $0x8] sm:$0xff]
        %v301 = vld [vmem:[%s2 + $0x10] sm:$0xff]
        %v302 = vld [vmem:[%s2 + $0x18] sm:$0xff]
        %v303 = vld [vmem:[%s2 + $0x20] sm:$0xff]
        %v304 = vld [vmem:[%s2 + $0x28] sm:$0xff]
        %v305 = vld [vmem:[%s2 + $0x30] sm:$0xff]
        %v306 = vld [vmem:[%s2 + $0x38] sm:$0xff]
        %v307 = vld [vmem:[%s3] sm:$0xff]
        %v308 = vld [vmem:[%s3 + $0x8] sm:$0xff]
        %v309 = vld [vmem:[%s3 + $0x10] sm:$0xff]
        %v310 = vld [vmem:[%s3 + $0x18] sm:$0xff]
        %v311 = vld [vmem:[%s3 + $0x20] sm:$0xff]
        %v312 = vld [vmem:[%s3 + $0x28] sm:$0xff]
        %v313 = vld [vmem:[%s3 + $0x30] sm:$0xff]
        %v314 = vld [vmem:[%s3 + $0x38] sm:$0xff]
        %vm315 = vcmask 261120
        %v317 = vsel %vm315, %v307, 0
        %v320 = vsel %vm315, %v308, 0
        %v323 = vsel %vm315, %v309, 0
        %v326 = vsel %vm315, %v310, 0
        %v329 = vsel %vm315, %v311, 0
        %v332 = vsel %vm315, %v312, 0
        %v335 = vsel %vm315, %v313, 0
        %v338 = vsel %vm315, %v314, 0
        %340 = vmatpush.msra.mxu0 0.0
        %341 = vmatpush.msra.mxu0 0.0
        %342 = vmatpush.msra.mxu0 0.0
        %343 = vmatpush.msra.mxu0 0.0
        %344 = vmatpush.msra.mxu0 0.0
        %345 = vmatpush.msra.mxu0 0.0
        %346 = vmatpush.msra.mxu0 0.0
        %347 = vmatpush.msra.mxu0 0.0
        %348 = vmatpush.msra.mxu0 0.0
        %349 = vmatpush.msra.mxu0 0.0
        %350 = vmatpush.msra.mxu0 0.0
        %351 = vmatpush.msra.mxu0 0.0
        %352 = vmatpush.msra.mxu0 %v297
        %353 = vmatpush.msra.mxu0 %v295
        %354 = vmatpush.msra.mxu0 %v293
        %355 = vmatpush.msra.mxu0 %v291
        %356 = vmatmul.f32.gmra.mxu0 %v317
        %v357 = vpop.f32.mrf.mxu0
        %v358 = vadd.f32 0.0, %v357
        %359 = vmatmul.f32.gmra.mxu0 %v320
        %v360 = vpop.f32.mrf.mxu0
        %v361 = vadd.f32 0.0, %v360
        %362 = vmatmul.f32.gmra.mxu0 %v323
        %v363 = vpop.f32.mrf.mxu0
        %v364 = vadd.f32 0.0, %v363
        %365 = vmatmul.f32.gmra.mxu0 %v326
        %v366 = vpop.f32.mrf.mxu0
        %v367 = vadd.f32 0.0, %v366
        %368 = vmatmul.f32.gmra.mxu0 %v329
        %v369 = vpop.f32.mrf.mxu0
        %v370 = vadd.f32 0.0, %v369
        %371 = vmatmul.f32.gmra.mxu0 %v332
        %v372 = vpop.f32.mrf.mxu0
        %v373 = vadd.f32 0.0, %v372
        %374 = vmatmul.f32.gmra.mxu0 %v335
        %v375 = vpop.f32.mrf.mxu0
        %v376 = vadd.f32 0.0, %v375
        %377 = vmatmul.f32.gmra.mxu0 %v338
        %v378 = vpop.f32.mrf.mxu0
        %v379 = vadd.f32 0.0, %v378
        %380 = vdwg.mxu0
        %381 = vmatpush.msra.mxu0 0.0
        %382 = vmatpush.msra.mxu0 0.0
        %383 = vmatpush.msra.mxu0 0.0
        %384 = vmatpush.msra.mxu0 0.0
        %385 = vmatpush.msra.mxu0 0.0
        %386 = vmatpush.msra.mxu0 0.0
        %387 = vmatpush.msra.mxu0 0.0
        %388 = vmatpush.msra.mxu0 0.0
        %389 = vmatpush.msra.mxu0 0.0
        %390 = vmatpush.msra.mxu0 0.0
        %391 = vmatpush.msra.mxu0 0.0
        %392 = vmatpush.msra.mxu0 0.0
        %393 = vmatpush.msra.mxu0 %v298
        %394 = vmatpush.msra.mxu0 %v296
        %395 = vmatpush.msra.mxu0 %v294
        %396 = vmatpush.msra.mxu0 %v292
        %397 = vmatmul.f32.gmra.mxu0 %v317
        %v398 = vpop.f32.mrf.mxu0
        %v399 = vadd.f32 0.0, %v398
        %400 = vmatmul.f32.gmra.mxu0 %v320
        %v401 = vpop.f32.mrf.mxu0
        %v402 = vadd.f32 0.0, %v401
        %403 = vmatmul.f32.gmra.mxu0 %v323
        %v404 = vpop.f32.mrf.mxu0
        %v405 = vadd.f32 0.0, %v404
        %406 = vmatmul.f32.gmra.mxu0 %v326
        %v407 = vpop.f32.mrf.mxu0
        %v408 = vadd.f32 0.0, %v407
        %409 = vmatmul.f32.gmra.mxu0 %v329
        %v410 = vpop.f32.mrf.mxu0
        %v411 = vadd.f32 0.0, %v410
        %412 = vmatmul.f32.gmra.mxu0 %v332
        %v413 = vpop.f32.mrf.mxu0
        %v414 = vadd.f32 0.0, %v413
        %415 = vmatmul.f32.gmra.mxu0 %v335
        %v416 = vpop.f32.mrf.mxu0
        %v417 = vadd.f32 0.0, %v416
        %418 = vmatmul.f32.gmra.mxu0 %v338
        %v419 = vpop.f32.mrf.mxu0
        %v420 = vadd.f32 0.0, %v419
        %421 = vdwg.mxu0
        %423 = vst [vmem:[#allocation1] ss:$2 sm:$0xff] %v290
        %v424 = vld.sshfl [vmem:[#allocation1] sm:$0xff pattern:$0x75316420]
        %v425 = vld.sshfl [vmem:[#allocation1 + $0x8] sm:$0xff pattern:$0x75316420]
        %vm426 = vcmask 31744
        %v428 = vsel %vm426, %v299, 0
        %v431 = vsel %vm426, %v300, 0
        %v434 = vsel %vm426, %v301, 0
        %v437 = vsel %vm426, %v302, 0
        %v440 = vsel %vm426, %v303, 0
        %v443 = vsel %vm426, %v304, 0
        %v446 = vsel %vm426, %v305, 0
        %v449 = vsel %vm426, %v306, 0
        %vm451 = vcmask 1043456
        %v452 = vsel %vm451, %v424, 0
        %v454 = vsel %vm451, %v425, 0
        %456 = vmatpush.msra.mxu0 0.0
        %457 = vmatpush.msra.mxu0 0.0
        %458 = vmatpush.msra.mxu0 0.0
        %459 = vmatpush.msra.mxu0 0.0
        %460 = vmatpush.msra.mxu0 0.0
        %461 = vmatpush.msra.mxu0 0.0
        %462 = vmatpush.msra.mxu0 0.0
        %463 = vmatpush.msra.mxu0 0.0
        %464 = vmatpush.msra.mxu0 0.0
        %465 = vmatpush.msra.mxu0 0.0
        %466 = vmatpush.msra.mxu0 0.0
        %467 = vmatpush.msra.mxu0 0.0
        %468 = vmatpush.msra.mxu0 0.0
        %469 = vmatpush.msra.mxu0 0.0
        %470 = vmatpush.msra.mxu0 0.0
        %471 = vmatpush.msra.mxu0 %v452
        %472 = vmatmul.f32.gmra.mxu0 %v428
        %v473 = vpop.f32.mrf.mxu0
        %v474 = vadd.f32 %v358, %v473
        %475 = vmatmul.f32.gmra.mxu0 %v431
        %v476 = vpop.f32.mrf.mxu0
        %v477 = vadd.f32 %v361, %v476
        %478 = vmatmul.f32.gmra.mxu0 %v434
        %v479 = vpop.f32.mrf.mxu0
        %v480 = vadd.f32 %v364, %v479
        %481 = vmatmul.f32.gmra.mxu0 %v437
        %v482 = vpop.f32.mrf.mxu0
        %v483 = vadd.f32 %v367, %v482
        %484 = vmatmul.f32.gmra.mxu0 %v440
        %v485 = vpop.f32.mrf.mxu0
        %v486 = vadd.f32 %v370, %v485
        %487 = vmatmul.f32.gmra.mxu0 %v443
        %v488 = vpop.f32.mrf.mxu0
        %v489 = vadd.f32 %v373, %v488
        %490 = vmatmul.f32.gmra.mxu0 %v446
        %v491 = vpop.f32.mrf.mxu0
        %v492 = vadd.f32 %v376, %v491
        %493 = vmatmul.f32.gmra.mxu0 %v449
        %v494 = vpop.f32.mrf.mxu0
        %v495 = vadd.f32 %v379, %v494
        %496 = vdwg.mxu0
        %497 = vmatpush.msra.mxu0 0.0
        %498 = vmatpush.msra.mxu0 0.0
        %499 = vmatpush.msra.mxu0 0.0
        %500 = vmatpush.msra.mxu0 0.0
        %501 = vmatpush.msra.mxu0 0.0
        %502 = vmatpush.msra.mxu0 0.0
        %503 = vmatpush.msra.mxu0 0.0
        %504 = vmatpush.msra.mxu0 0.0
        %505 = vmatpush.msra.mxu0 0.0
        %506 = vmatpush.msra.mxu0 0.0
        %507 = vmatpush.msra.mxu0 0.0
        %508 = vmatpush.msra.mxu0 0.0
        %509 = vmatpush.msra.mxu0 0.0
        %510 = vmatpush.msra.mxu0 0.0
        %511 = vmatpush.msra.mxu0 0.0
        %512 = vmatpush.msra.mxu0 %v454
        %513 = vmatmul.f32.gmra.mxu0 %v428
        %v514 = vpop.f32.mrf.mxu0
        %v515 = vadd.f32 %v399, %v514
        %516 = vmatmul.f32.gmra.mxu0 %v431
        %v517 = vpop.f32.mrf.mxu0
        %v518 = vadd.f32 %v402, %v517
        %519 = vmatmul.f32.gmra.mxu0 %v434
        %v520 = vpop.f32.mrf.mxu0
        %v521 = vadd.f32 %v405, %v520
        %522 = vmatmul.f32.gmra.mxu0 %v437
        %v523 = vpop.f32.mrf.mxu0
        %v524 = vadd.f32 %v408, %v523
        %525 = vmatmul.f32.gmra.mxu0 %v440
        %v526 = vpop.f32.mrf.mxu0
        %v527 = vadd.f32 %v411, %v526
        %528 = vmatmul.f32.gmra.mxu0 %v443
        %v529 = vpop.f32.mrf.mxu0
        %v530 = vadd.f32 %v414, %v529
        %531 = vmatmul.f32.gmra.mxu0 %v446
        %v532 = vpop.f32.mrf.mxu0
        %v533 = vadd.f32 %v417, %v532
        %534 = vmatmul.f32.gmra.mxu0 %v449
        %v535 = vpop.f32.mrf.mxu0
        %v536 = vadd.f32 %v420, %v535
        %537 = vdwg.mxu0
        %v538 = vld [vmem:[%s4] sm:$0xff]
        %v539 = vld [vmem:[%s4 + $0x8] sm:$0xff]
        %v540 = vld [vmem:[%s4 + $0x10] sm:$0xff]
        %v541 = vld [vmem:[%s4 + $0x18] sm:$0xff]
        %v542 = vld [vmem:[%s4 + $0x20] sm:$0xff]
        %v543 = vld [vmem:[%s4 + $0x28] sm:$0xff]
        %v544 = vld [vmem:[%s4 + $0x30] sm:$0xff]
        %v545 = vld [vmem:[%s4 + $0x38] sm:$0xff]
        %547 = vset.pattern.permute.xlu0 0
        %548 = vperm.xlu0 %547, %v538
        %v549 = vpop.permute.xlu0 %548
        %552 = vset.pattern.permute.xlu0 0
        %553 = vperm.xlu0 %552, %v539
        %v554 = vpop.permute.xlu0 %553
        %557 = vset.pattern.permute.xlu0 0
        %558 = vperm.xlu0 %557, %v540
        %v559 = vpop.permute.xlu0 %558
        %562 = vset.pattern.permute.xlu0 0
        %563 = vperm.xlu0 %562, %v541
        %v564 = vpop.permute.xlu0 %563
        %567 = vset.pattern.permute.xlu0 0
        %568 = vperm.xlu0 %567, %v542
        %v569 = vpop.permute.xlu0 %568
        %572 = vset.pattern.permute.xlu0 0
        %573 = vperm.xlu0 %572, %v543
        %v574 = vpop.permute.xlu0 %573
        %577 = vset.pattern.permute.xlu0 0
        %578 = vperm.xlu0 %577, %v544
        %v579 = vpop.permute.xlu0 %578
        %582 = vset.pattern.permute.xlu0 0
        %583 = vperm.xlu0 %582, %v545
        %v584 = vpop.permute.xlu0 %583
        %v586 = vadd.f32 %v474, %v549
        %v587 = vadd.f32 %v515, %v549
        %v588 = vadd.f32 %v477, %v554
        %v589 = vadd.f32 %v518, %v554
        %v590 = vadd.f32 %v480, %v559
        %v591 = vadd.f32 %v521, %v559
        %v592 = vadd.f32 %v483, %v564
        %v593 = vadd.f32 %v524, %v564
        %v594 = vadd.f32 %v486, %v569
        %v595 = vadd.f32 %v527, %v569
        %v596 = vadd.f32 %v489, %v574
        %v597 = vadd.f32 %v530, %v574
        %v598 = vadd.f32 %v492, %v579
        %v599 = vadd.f32 %v533, %v579
        %v600 = vadd.f32 %v495, %v584
        %v601 = vadd.f32 %v536, %v584
        %v602 = vxor.u32 %v586, 2147483648
        %v603 = vxor.u32 %v587, 2147483648
        %v604 = vxor.u32 %v588, 2147483648
        %v605 = vxor.u32 %v589, 2147483648
        %v606 = vxor.u32 %v590, 2147483648
        %v607 = vxor.u32 %v591, 2147483648
        %v608 = vxor.u32 %v592, 2147483648
        %v609 = vxor.u32 %v593, 2147483648
        %v610 = vmul.f32 %v602, 1.442695
        %v611 = vpow.pop %v610
        %v612 = vmul.f32 %v603, 1.442695
        %v613 = vpow.pop %v612
        %v614 = vmul.f32 %v604, 1.442695
        %v615 = vpow.pop %v614
        %v616 = vmul.f32 %v605, 1.442695
        %v617 = vpow.pop %v616
        %v618 = vmul.f32 %v606, 1.442695
        %v619 = vpow.pop %v618
        %v620 = vmul.f32 %v607, 1.442695
        %v621 = vpow.pop %v620
        %v622 = vmul.f32 %v608, 1.442695
        %v623 = vpow.pop %v622
        %v624 = vmul.f32 %v609, 1.442695
        %v625 = vpow.pop %v624
        %v626 = vadd.f32 %v611, 1.0
        %v627 = vadd.f32 %v613, 1.0
        %v628 = vadd.f32 %v615, 1.0
        %v629 = vadd.f32 %v617, 1.0
        %v630 = vadd.f32 %v619, 1.0
        %v631 = vadd.f32 %v621, 1.0
        %v632 = vadd.f32 %v623, 1.0
        %v633 = vadd.f32 %v625, 1.0
        %v634 = vrcp.pop %v626
        %v635 = vmul.f32 %v626, %v634
        %v636 = vsub.f32 1.0, %v635
        %v637 = vmul.f32 %v634, %v636
        %v638 = vadd.f32 %v634, %v637
        %vm639 = vweird.f32 %v626
        %vm640 = vweird.f32 %v634
        %vm641 = vmor %vm639, %vm640
        %v642 = vsel %vm641, %v634, %v638
        %v643 = vand.u32 2147483647, %v626
        %vm644 = vcmp.eq.f32.partialorder %v643, 8.507059e+37
        %v645 = vand.u32 %v626, 2147483648
        %v646 = vor.u32 1.1754944e-38, %v645
        %v647 = vsel %vm644, %v646, %v642
        %v648 = vmul.f32 1.0, %v647
        %v649 = vrcp.pop %v627
        %v650 = vmul.f32 %v627, %v649
        %v651 = vsub.f32 1.0, %v650
        %v652 = vmul.f32 %v649, %v651
        %v653 = vadd.f32 %v649, %v652
        %vm654 = vweird.f32 %v627
        %vm655 = vweird.f32 %v649
        %vm656 = vmor %vm654, %vm655
        %v657 = vsel %vm656, %v649, %v653
        %v658 = vand.u32 2147483647, %v627
        %vm659 = vcmp.eq.f32.partialorder %v658, 8.507059e+37
        %v660 = vand.u32 %v627, 2147483648
        %v661 = vor.u32 1.1754944e-38, %v660
        %v662 = vsel %vm659, %v661, %v657
        %v663 = vmul.f32 1.0, %v662
        %v664 = vrcp.pop %v628
        %v665 = vmul.f32 %v628, %v664
        %v666 = vsub.f32 1.0, %v665
        %v667 = vmul.f32 %v664, %v666
        %v668 = vadd.f32 %v664, %v667
        %vm669 = vweird.f32 %v628
        %vm670 = vweird.f32 %v664
        %vm671 = vmor %vm669, %vm670
        %v672 = vsel %vm671, %v664, %v668
        %v673 = vand.u32 2147483647, %v628
        %vm674 = vcmp.eq.f32.partialorder %v673, 8.507059e+37
        %v675 = vand.u32 %v628, 2147483648
        %v676 = vor.u32 1.1754944e-38, %v675
        %v677 = vsel %vm674, %v676, %v672
        %v678 = vmul.f32 1.0, %v677
        %v679 = vrcp.pop %v629
        %v680 = vmul.f32 %v629, %v679
        %v681 = vsub.f32 1.0, %v680
        %v682 = vmul.f32 %v679, %v681
        %v683 = vadd.f32 %v679, %v682
        %vm684 = vweird.f32 %v629
        %vm685 = vweird.f32 %v679
        %vm686 = vmor %vm684, %vm685
        %v687 = vsel %vm686, %v679, %v683
        %v688 = vand.u32 2147483647, %v629
        %vm689 = vcmp.eq.f32.partialorder %v688, 8.507059e+37
        %v690 = vand.u32 %v629, 2147483648
        %v691 = vor.u32 1.1754944e-38, %v690
        %v692 = vsel %vm689, %v691, %v687
        %v693 = vmul.f32 1.0, %v692
        %v694 = vrcp.pop %v630
        %v695 = vmul.f32 %v630, %v694
        %v696 = vsub.f32 1.0, %v695
        %v697 = vmul.f32 %v694, %v696
        %v698 = vadd.f32 %v694, %v697
        %vm699 = vweird.f32 %v630
        %vm700 = vweird.f32 %v694
        %vm701 = vmor %vm699, %vm700
        %v702 = vsel %vm701, %v694, %v698
        %v703 = vand.u32 2147483647, %v630
        %vm704 = vcmp.eq.f32.partialorder %v703, 8.507059e+37
        %v705 = vand.u32 %v630, 2147483648
        %v706 = vor.u32 1.1754944e-38, %v705
        %v707 = vsel %vm704, %v706, %v702
        %v708 = vmul.f32 1.0, %v707
        %v709 = vrcp.pop %v631
        %v710 = vmul.f32 %v631, %v709
        %v711 = vsub.f32 1.0, %v710
        %v712 = vmul.f32 %v709, %v711
        %v713 = vadd.f32 %v709, %v712
        %vm714 = vweird.f32 %v631
        %vm715 = vweird.f32 %v709
        %vm716 = vmor %vm714, %vm715
        %v717 = vsel %vm716, %v709, %v713
        %v718 = vand.u32 2147483647, %v631
        %vm719 = vcmp.eq.f32.partialorder %v718, 8.507059e+37
        %v720 = vand.u32 %v631, 2147483648
        %v721 = vor.u32 1.1754944e-38, %v720
        %v722 = vsel %vm719, %v721, %v717
        %v723 = vmul.f32 1.0, %v722
        %v724 = vrcp.pop %v632
        %v725 = vmul.f32 %v632, %v724
        %v726 = vsub.f32 1.0, %v725
        %v727 = vmul.f32 %v724, %v726
        %v728 = vadd.f32 %v724, %v727
        %vm729 = vweird.f32 %v632
        %vm730 = vweird.f32 %v724
        %vm731 = vmor %vm729, %vm730
        %v732 = vsel %vm731, %v724, %v728
        %v733 = vand.u32 2147483647, %v632
        %vm734 = vcmp.eq.f32.partialorder %v733, 8.507059e+37
        %v735 = vand.u32 %v632, 2147483648
        %v736 = vor.u32 1.1754944e-38, %v735
        %v737 = vsel %vm734, %v736, %v732
        %v738 = vmul.f32 1.0, %v737
        %v739 = vrcp.pop %v633
        %v740 = vmul.f32 %v633, %v739
        %v741 = vsub.f32 1.0, %v740
        %v742 = vmul.f32 %v739, %v741
        %v743 = vadd.f32 %v739, %v742
        %vm744 = vweird.f32 %v633
        %vm745 = vweird.f32 %v739
        %vm746 = vmor %vm744, %vm745
        %v747 = vsel %vm746, %v739, %v743
        %v748 = vand.u32 2147483647, %v633
        %vm749 = vcmp.eq.f32.partialorder %v748, 8.507059e+37
        %v750 = vand.u32 %v633, 2147483648
        %v751 = vor.u32 1.1754944e-38, %v750
        %v752 = vsel %vm749, %v751, %v747
        %v753 = vmul.f32 1.0, %v752
        %v754 = vtanh.pop %v291
        %v755 = vtanh.pop %v292
        %v756 = vtanh.pop %v293
        %v757 = vtanh.pop %v294
        %v758 = vtanh.pop %v295
        %v759 = vtanh.pop %v296
        %v760 = vtanh.pop %v297
        %v761 = vtanh.pop %v298
        %v762 = vmul.f32 %v648, %v754
        %v763 = vmul.f32 %v663, %v755
        %v764 = vmul.f32 %v678, %v756
        %v765 = vmul.f32 %v693, %v757
        %v766 = vmul.f32 %v708, %v758
        %v767 = vmul.f32 %v723, %v759
        %v768 = vmul.f32 %v738, %v760
        %v769 = vmul.f32 %v753, %v761
        %v770 = vsub.f32 1.0, %v648
        %v771 = vsub.f32 1.0, %v663
        %v772 = vsub.f32 1.0, %v678
        %v773 = vsub.f32 1.0, %v693
        %v774 = vsub.f32 1.0, %v708
        %v775 = vsub.f32 1.0, %v723
        %v776 = vsub.f32 1.0, %v738
        %v777 = vsub.f32 1.0, %v753
        %v778 = vtanh.pop %v594
        %v779 = vtanh.pop %v595
        %v780 = vtanh.pop %v596
        %v781 = vtanh.pop %v597
        %v782 = vtanh.pop %v598
        %v783 = vtanh.pop %v599
        %v784 = vtanh.pop %v600
        %v785 = vtanh.pop %v601
        %v786 = vmul.f32 %v770, %v778
        %v787 = vmul.f32 %v771, %v779
        %v788 = vmul.f32 %v772, %v780
        %v789 = vmul.f32 %v773, %v781
        %v790 = vmul.f32 %v774, %v782
        %v791 = vmul.f32 %v775, %v783
        %v792 = vmul.f32 %v776, %v784
        %v793 = vmul.f32 %v777, %v785
        %v794 = vadd.f32 %v762, %v786
        %v795 = vadd.f32 %v763, %v787
        %v796 = vadd.f32 %v764, %v788
        %v797 = vadd.f32 %v765, %v789
        %v798 = vadd.f32 %v766, %v790
        %v799 = vadd.f32 %v767, %v791
        %v800 = vadd.f32 %v768, %v792
        %v801 = vadd.f32 %v769, %v793
        %802 = vst [vmem:[%s268] sm:$0xff] %v794
        %803 = vst [vmem:[%s268 + $0x8] sm:$0xff] %v795
        %804 = vst [vmem:[%s268 + $0x10] sm:$0xff] %v796
        %805 = vst [vmem:[%s268 + $0x18] sm:$0xff] %v797
        %806 = vst [vmem:[%s268 + $0x20] sm:$0xff] %v798
        %807 = vst [vmem:[%s268 + $0x28] sm:$0xff] %v799
        %808 = vst [vmem:[%s268 + $0x30] sm:$0xff] %v800
        %809 = vst [vmem:[%s268 + $0x38] sm:$0xff] %v801
        %s810 = sand.u32 %s160, 1
        %s811 = scalar_lea.sflag [#allocation3], %s810
        %s812 = sand.u32 %s160, 1
        %s813 = smul.addr %s812, 64
        %s814 = scalar_lea.vmem [#allocation2], %s813
        // Predicated region
        $region41: #{tpu_custom_call.1} parent=39 // pred_check
          %p815 = pneg %p170
        $region42: #{tpu_custom_call.1} parent=39 // pred_check_branch
          %817 = sbr.rel (%p815) target = $region44
        $region43: #{tpu_custom_call.1} parent=39 // pred_region
          %s818 = smul.u32 2, %s24
          %820 = vsyncadd %s811, 0
          %s821 = smul.addr %s23, 8
          %s822 = sadd.s32 %s818, %s821
          %s823 = smul.addr %s822, 8
          %s824 = scalar_lea.hbm %s5, %s823
          %s825 = sshll.u32 %s814, 4
          %s826 = int_to_ptr.vmem [resolvable:$true] %s825
          %s827 = sshll.u32 %s824, 4
          %s828 = int_to_ptr.hbm [resolvable:$true] %s827
          %833 = dma.vmem_to_hbm [thread:$0]  %s826, 1024, %s828, %s811, 256, 256, 16
        $region44: #{tpu_custom_call.1} parent=39 // pred_fallthru
          _
      $region40: #{tpu_custom_call.1} parent=5 // pred_fallthru
        _
      %p834 = scmp.le.s32.totalorder 2, %s14
      // Predicated region
      $region45: #{tpu_custom_call.1} parent=5 // pred_check
        %p835 = pneg %p834
      $region46: #{tpu_custom_call.1} parent=5 // pred_check_branch
        %837 = sbr.rel (%p835) target = $region48
      $region47: #{tpu_custom_call.1} parent=5 // pred_region
        %s838 = ssub.s32 %s14, 2
        // Predicated region
        $region49: #{tpu_custom_call.1} parent=47 // pred_check
          %p839 = pneg %p176
        $region50: #{tpu_custom_call.1} parent=47 // pred_check_branch
          %841 = sbr.rel (%p839) target = $region52
        $region51: #{tpu_custom_call.1} parent=47 // pred_region
          %s842 = sand.u32 %s161, 1
          %s843 = scalar_lea.sflag [#allocation3], %s842
          %s844 = sand.u32 %s161, 1
          %s845 = smul.addr %s844, 64
          %s846 = scalar_lea.vmem [#allocation2], %s845
          %848 = dma.done %s843, 1024
        $region52: #{tpu_custom_call.1} parent=47 // pred_fallthru
          _
      $region48: #{tpu_custom_call.1} parent=5 // pred_fallthru
        _
    $region6: #{tpu_custom_call.1} parent=1 // loop_footer
      %s18 = sadd.s32 1, %s14
    $region7: #{tpu_custom_call.1} parent=1 // loop_footer_branch
      %13 = sbr.rel target = $region3
    $region8: #{tpu_custom_call.1} parent=1 // loop_exit
      _
    %849 = vsyncpa [#allocation3], 1
    %s850 = scalar_lea.sflag [#allocation3], 1
    %851 = vsyncpa %s850, 1

</llo_original>
